<compile_context>
chip_gen: v5e
topology: v5e:2x2
jax: 0.10.0
libtpu: 0.0.40
codegen_flags: <defaults>
</compile_context>

<pallas_src>
import jax
import jax.numpy as jnp
from jax.experimental import pallas as pl
from jax.experimental.pallas import tpu as pltpu

NEG_SLOPE = 0.01   # default negative_slope of F.leaky_relu / nn.LeakyReLU
LANE = 128


def _lrelu(v):
    return jnp.where(v >= 0, v, NEG_SLOPE * v)


def _round_up(x, m):
    return (x + m - 1) // m * m


# --------------------------------------------------------------------------
# Kernel 1: GCN layer 1
#   agg_i = sum_k A[i, k] @ msg0_k          (msg0 = dinv * x, bf16, prescaled)
#   h1_i  = leaky_relu((dinv_i * agg_i) @ W1 + b1)
#   msg1_i = (dinv_i * h1_i)  as bf16       (feeds kernel 2's aggregation)
# grid = (N/TM, N/TK); k is the reduction axis (accumulator in VMEM scratch).
# --------------------------------------------------------------------------
def gcn1_kernel(a_ref, m_ref, dinv_i_ref, w1_ref, b1_ref,
                h_ref, msg_ref, acc_ref):
    k = pl.program_id(1)

    @pl.when(k == 0)
    def _():
        acc_ref[...] = jnp.zeros_like(acc_ref)

    # bf16 x bf16 -> f32 aggregation on the MXU (only work in the inner loop)
    acc_ref[...] += jnp.dot(a_ref[...], m_ref[...],
                            preferred_element_type=jnp.float32)

    @pl.when(k == pl.num_programs(1) - 1)
    def _():
        agg = dinv_i_ref[...] * acc_ref[...]
        h = jnp.dot(agg, w1_ref[...],
                    preferred_element_type=jnp.float32) + b1_ref[...]
        h = _lrelu(h)
        h_ref[...] = h
        msg_ref[...] = (dinv_i_ref[...] * h).astype(jnp.bfloat16)


# --------------------------------------------------------------------------
# Kernel 2: GCN layer 2 + residual + MLP + residual.
#   agg_i = sum_k A[i, k] @ msg1_k           (msg1 = dinv * h1, bf16)
#   h2_i  = leaky_relu((dinv_i * agg_i) @ W2 + b2 + h1_i)
#   out_i = leaky_relu(MLP(h2_i) + h2_i)
# All row-local work fused into the finalize of the reduction over K.
# --------------------------------------------------------------------------
def gcn2_mlp_kernel(a_ref, m_ref, hi_ref, dinv_i_ref,
                    w2_ref, b2_ref, wm1_ref, bm1_ref, wm2_ref, bm2_ref,
                    out_ref, acc_ref):
    k = pl.program_id(1)

    @pl.when(k == 0)
    def _():
        acc_ref[...] = jnp.zeros_like(acc_ref)

    acc_ref[...] += jnp.dot(a_ref[...], m_ref[...],
                            preferred_element_type=jnp.float32)

    @pl.when(k == pl.num_programs(1) - 1)
    def _():
        h1 = hi_ref[...]
        conv2 = jnp.dot(dinv_i_ref[...] * acc_ref[...], w2_ref[...],
                        preferred_element_type=jnp.float32) + b2_ref[...]
        h2 = _lrelu(conv2 + h1)
        m = jnp.dot(h2, wm1_ref[...],
                    preferred_element_type=jnp.float32) + bm1_ref[...]
        m = _lrelu(m)
        m = jnp.dot(m, wm2_ref[...],
                    preferred_element_type=jnp.float32) + bm2_ref[...]
        out_ref[...] = _lrelu(m + h2)


# --------------------------------------------------------------------------
# Wrapper
# --------------------------------------------------------------------------
def graph_encoder_forward(x, edge_index, params, *, tile=128):
    """x: [N, in_channels] f32, edge_index: [2, E] int32, params: dict.
    tile=128 works on all generations; use 256 on v6e/v7x for large graphs."""
    n, c = x.shape
    hidden = params["w1"].shape[1]

    cp = _round_up(c, LANE)          # lane-dense input-feature dim
    hp = _round_up(hidden, LANE)     # lane-dense hidden dim
    n_pad = _round_up(n, tile)       # node axis padded to tile multiple

    # ---- raw adjacency counts via one-hot matmul (no XLA scatter) --------
    # Duplicate edges accumulate (like PyG scatter-add); self-loops are added
    # only to nodes without one (PyG add_remaining_self_loops semantics).
    src, dst = edge_index[0], edge_index[1]
    src_oh = jax.nn.one_hot(src, n, dtype=jnp.float32)     # [E, N]
    dst_oh = jax.nn.one_hot(dst, n, dtype=jnp.float32)     # [E, N]
    adj = jnp.dot(dst_oh.T, src_oh)                        # adj[dst, src]
    diag = jnp.diagonal(adj)
    adj = adj + jnp.diag(jnp.where(diag > 0, 0.0, 1.0))
    # TODO(synk): for very large graphs, build adjacency tiles in-kernel from
    # scalar-prefetched edge_index instead of an [E, N] one-hot in XLA.

    # degree / D^-1/2 (cheap O(N^2) read, no N^2 write; the normalization is
    # folded algebraically into the kernels)
    deg = adj.sum(axis=1)
    dinv = jnp.where(deg > 0, jax.lax.rsqrt(deg), 0.0).astype(jnp.float32)

    # ---- pad to tile-/lane-aligned shapes; adjacency stored as bf16 ------
    a_pad = jnp.zeros((n_pad, n_pad), jnp.bfloat16).at[:n, :n].set(
        adj.astype(jnp.bfloat16))
    dinv_pad = jnp.zeros((n_pad, 1), jnp.float32).at[:n, 0].set(dinv)
    # layer-1 message: source-side normalization prescaled, bf16 for the MXU
    msg0 = jnp.zeros((n_pad, cp), jnp.bfloat16).at[:n, :c].set(
        (dinv[:, None] * x).astype(jnp.bfloat16))

    def pad2(w, rows, cols):
        return jnp.zeros((rows, cols), jnp.float32).at[:w.shape[0], :w.shape[1]].set(w)

    w1 = pad2(params["w1"], cp, hp)
    b1 = pad2(params["b1"], 1, hp)
    w2 = pad2(params["w2"], hp, hp)
    b2 = pad2(params["b2"], 1, hp)
    wm1 = pad2(params["wm1"], hp, hp)
    bm1 = pad2(params["bm1"], 1, hp)
    wm2 = pad2(params["wm2"], hp, hp)
    bm2 = pad2(params["bm2"], 1, hp)

    grid = (n_pad // tile, n_pad // tile)
    compiler_params = pltpu.CompilerParams(
        dimension_semantics=("parallel", "arbitrary"),
        vmem_limit_bytes=32 * 1024 * 1024,
    )

    # ---- layer 1: emits h1 (f32, residual) and msg1 = dinv*h1 (bf16) -------
    h1, msg1 = pl.pallas_call(
        gcn1_kernel,
        out_shape=(jax.ShapeDtypeStruct((n_pad, hp), jnp.float32),
                   jax.ShapeDtypeStruct((n_pad, hp), jnp.bfloat16)),
        grid=grid,
        in_specs=[
            pl.BlockSpec((tile, tile), lambda i, k: (i, k)),   # A tile
            pl.BlockSpec((tile, cp), lambda i, k: (k, 0)),     # msg0 source tile
            pl.BlockSpec((tile, 1), lambda i, k: (i, 0)),      # dinv (rows)
            pl.BlockSpec((cp, hp), lambda i, k: (0, 0)),       # W1
            pl.BlockSpec((1, hp), lambda i, k: (0, 0)),        # b1
        ],
        out_specs=(pl.BlockSpec((tile, hp), lambda i, k: (i, 0)),
                   pl.BlockSpec((tile, hp), lambda i, k: (i, 0))),
        scratch_shapes=[pltpu.VMEM((tile, cp), jnp.float32)],
        compiler_params=compiler_params,
    )(a_pad, msg0, dinv_pad, w1, b1)

    # ---- layer 2 + residual + MLP + residual -------------------------------
    out = pl.pallas_call(
        gcn2_mlp_kernel,
        out_shape=jax.ShapeDtypeStruct((n_pad, hp), jnp.float32),
        grid=grid,
        in_specs=[
            pl.BlockSpec((tile, tile), lambda i, k: (i, k)),   # A tile
            pl.BlockSpec((tile, hp), lambda i, k: (k, 0)),     # msg1 source tile
            pl.BlockSpec((tile, hp), lambda i, k: (i, 0)),     # h1 residual tile
            pl.BlockSpec((tile, 1), lambda i, k: (i, 0)),      # dinv (rows)
            pl.BlockSpec((hp, hp), lambda i, k: (0, 0)),       # W2
            pl.BlockSpec((1, hp), lambda i, k: (0, 0)),        # b2
            pl.BlockSpec((hp, hp), lambda i, k: (0, 0)),       # Wm1
            pl.BlockSpec((1, hp), lambda i, k: (0, 0)),        # bm1
            pl.BlockSpec((hp, hp), lambda i, k: (0, 0)),       # Wm2
            pl.BlockSpec((1, hp), lambda i, k: (0, 0)),        # bm2
        ],
        out_specs=pl.BlockSpec((tile, hp), lambda i, k: (i, 0)),
        scratch_shapes=[pltpu.VMEM((tile, hp), jnp.float32)],
        compiler_params=compiler_params,
    )(a_pad, msg1, h1, dinv_pad, w2, b2, wm1, bm1, wm2, bm2)

    # strip node / hidden padding
    return out[:n, :hidden]


def init_params(key, in_channels, hidden_dim):
    """Deterministic synthetic init (kaiming-normal for linears, glorot-ish for
    GCN weights, zero biases — matches the module's init intent)."""
    k1, k2, k3, k4 = jax.random.split(key, 4)

    def glorot(k, fan_in, fan_out):
        std = (2.0 / (fan_in + fan_out)) ** 0.5
        return std * jax.random.normal(k, (fan_in, fan_out), jnp.float32)

    def kaiming(k, fan_in, fan_out):
        std = (2.0 / fan_in) ** 0.5
        return std * jax.random.normal(k, (fan_in, fan_out), jnp.float32)

    return {
        "w1": glorot(k1, in_channels, hidden_dim),
        "b1": jnp.zeros((1, hidden_dim), jnp.float32),
        "w2": glorot(k2, hidden_dim, hidden_dim),
        "b2": jnp.zeros((1, hidden_dim), jnp.float32),
        "wm1": kaiming(k3, hidden_dim, hidden_dim),
        "bm1": jnp.zeros((1, hidden_dim), jnp.float32),
        "wm2": kaiming(k4, hidden_dim, hidden_dim),
        "bm2": jnp.zeros((1, hidden_dim), jnp.float32),
    }


if __name__ == "__main__":
    key = jax.random.PRNGKey(0)
    k_x, k_e, k_p = jax.random.split(key, 3)

    num_nodes = 16
    in_channels = 8
    hidden_dim = 32
    num_edges = 24

    x = jax.random.normal(k_x, (num_nodes, in_channels), jnp.float32)
    edge_index = jax.random.randint(k_e, (2, num_edges), 0, num_nodes,
                                    dtype=jnp.int32)
    params = init_params(k_p, in_channels, hidden_dim)

    out = graph_encoder_forward(x, edge_index, params)
    out = jax.block_until_ready(out)
    assert out.shape == (num_nodes, hidden_dim)
    assert jnp.all(jnp.isfinite(out))
    print("KERNEL_OK")
</pallas_src>

<mosaic_0001>
module attributes {stable_mosaic.version = 11 : i64} {
  func.func @gcn1_kernel(%arg0: i32, %arg1: i32, %arg2: memref<128x128xbf16, #tpu.memory_space<vmem>>, %arg3: memref<128x128xbf16, #tpu.memory_space<vmem>>, %arg4: memref<128x1xf32, #tpu.memory_space<vmem>>, %arg5: memref<128x128xf32, #tpu.memory_space<vmem>>, %arg6: memref<1x128xf32, #tpu.memory_space<vmem>>, %arg7: memref<128x128xf32, #tpu.memory_space<vmem>>, %arg8: memref<128x128xbf16, #tpu.memory_space<vmem>>, %arg9: memref<128x128xf32, #tpu.memory_space<vmem>>) attributes {dimension_semantics = [#tpu.dimension_semantics<parallel>, #tpu.dimension_semantics<arbitrary>], iteration_bounds = array<i64: 1, 1>, scalar_prefetch = 0 : i64, scratch_operands = 1 : i64, tpu.core_type = #tpu.core_type<tc>, window_params = [{transform_indices = @transform_0, window_bounds = array<i64: 128, 128>}, {transform_indices = @transform_1, window_bounds = array<i64: 128, 128>}, {transform_indices = @transform_2, window_bounds = array<i64: 128, 1>}, {pipeline_mode = #tpu.pipeline_mode<synchronous>, transform_indices = @transform_3, window_bounds = array<i64: 128, 128>}, {pipeline_mode = #tpu.pipeline_mode<synchronous>, transform_indices = @transform_4, window_bounds = array<i64: 1, 128>}, {transform_indices = @transform_5, window_bounds = array<i64: 128, 128>}, {transform_indices = @transform_6, window_bounds = array<i64: 128, 128>}]} {
    %c0_i32 = arith.constant 0 : i32
    %0 = arith.cmpi eq, %arg1, %c0_i32 : i32
    %1 = arith.extui %0 : i1 to i32
    %c0_i32_0 = arith.constant 0 : i32
    %2 = arith.cmpi ne, %1, %c0_i32_0 : i32
    scf.if %2 {
      %cst_10 = arith.constant 0.000000e+00 : f32
      %12 = vector.broadcast %cst_10 : f32 to vector<128x128xf32>
      %c0_11 = arith.constant 0 : index
      %c0_12 = arith.constant 0 : index
      %13 = vector.load %arg9[%c0_11, %c0_12] : memref<128x128xf32, #tpu.memory_space<vmem>>, vector<128x128xf32>
      tpu.vector_store %arg9[%c0_11, %c0_12], %12 {strides = array<i32>} : memref<128x128xf32, #tpu.memory_space<vmem>>, vector<128x128xf32>,
    } else {
    }
    %c0 = arith.constant 0 : index
    %c0_1 = arith.constant 0 : index
    %3 = vector.load %arg9[%c0, %c0_1] : memref<128x128xf32, #tpu.memory_space<vmem>>, vector<128x128xf32>
    %c0_2 = arith.constant 0 : index
    %c0_3 = arith.constant 0 : index
    %4 = vector.load %arg2[%c0_2, %c0_3] : memref<128x128xbf16, #tpu.memory_space<vmem>>, vector<128x128xbf16>
    %c0_4 = arith.constant 0 : index
    %c0_5 = arith.constant 0 : index
    %5 = vector.load %arg3[%c0_4, %c0_5] : memref<128x128xbf16, #tpu.memory_space<vmem>>, vector<128x128xbf16>
    %cst = arith.constant dense<0.000000e+00> : vector<128x128xf32>
    %6 = tpu.matmul %4, %5, %cst {dimension_numbers = #tpu.dot_dimension_numbers<[1], [0], [0], [1], [0, 0, 1, 1], [], []>} : vector<128x128xbf16>, vector<128x128xbf16>, vector<128x128xf32> -> vector<128x128xf32>
    %7 = arith.addf %3, %6 : vector<128x128xf32>
    %c0_6 = arith.constant 0 : index
    %c0_7 = arith.constant 0 : index
    %8 = vector.load %arg9[%c0_6, %c0_7] : memref<128x128xf32, #tpu.memory_space<vmem>>, vector<128x128xf32>
    tpu.vector_store %arg9[%c0_6, %c0_7], %7 {strides = array<i32>} : memref<128x128xf32, #tpu.memory_space<vmem>>, vector<128x128xf32>,
    %c0_i32_8 = arith.constant 0 : i32
    %9 = arith.cmpi eq, %arg1, %c0_i32_8 : i32
    %10 = arith.extui %9 : i1 to i32
    %c0_i32_9 = arith.constant 0 : i32
    %11 = arith.cmpi ne, %10, %c0_i32_9 : i32
    scf.if %11 {
      %c0_10 = arith.constant 0 : index
      %c0_11 = arith.constant 0 : index
      %12 = vector.load %arg4[%c0_10, %c0_11] : memref<128x1xf32, #tpu.memory_space<vmem>>, vector<128x1xf32>
      %c0_12 = arith.constant 0 : index
      %c0_13 = arith.constant 0 : index
      %13 = vector.load %arg9[%c0_12, %c0_13] : memref<128x128xf32, #tpu.memory_space<vmem>>, vector<128x128xf32>
      %14 = vector.broadcast %12 : vector<128x1xf32> to vector<128x128xf32>
      %15 = arith.mulf %14, %13 : vector<128x128xf32>
      %c0_14 = arith.constant 0 : index
      %c0_15 = arith.constant 0 : index
      %16 = vector.load %arg5[%c0_14, %c0_15] : memref<128x128xf32, #tpu.memory_space<vmem>>, vector<128x128xf32>
      %cst_16 = arith.constant dense<0.000000e+00> : vector<128x128xf32>
      %17 = tpu.matmul %15, %16, %cst_16 {dimension_numbers = #tpu.dot_dimension_numbers<[1], [0], [0], [1], [0, 0, 1, 1], [], []>} : vector<128x128xf32>, vector<128x128xf32>, vector<128x128xf32> -> vector<128x128xf32>
      %c0_17 = arith.constant 0 : index
      %c0_18 = arith.constant 0 : index
      %18 = vector.load %arg6[%c0_17, %c0_18] : memref<1x128xf32, #tpu.memory_space<vmem>>, vector<1x128xf32>
      %19 = vector.broadcast %18 : vector<1x128xf32> to vector<128x128xf32>
      %20 = arith.addf %17, %19 : vector<128x128xf32>
      %cst_19 = arith.constant 0.000000e+00 : f32
      %21 = vector.broadcast %cst_19 : f32 to vector<128x128xf32>
      %22 = arith.cmpf oge, %20, %21 : vector<128x128xf32>
      %cst_20 = arith.constant 0.00999999977 : f32
      %23 = vector.broadcast %cst_20 : f32 to vector<128x128xf32>
      %24 = arith.mulf %23, %20 : vector<128x128xf32>
      %25 = arith.select %22, %20, %24 : vector<128x128xi1>, vector<128x128xf32>
      %c0_21 = arith.constant 0 : index
      %c0_22 = arith.constant 0 : index
      %26 = vector.load %arg7[%c0_21, %c0_22] : memref<128x128xf32, #tpu.memory_space<vmem>>, vector<128x128xf32>
      tpu.vector_store %arg7[%c0_21, %c0_22], %25 {strides = array<i32>} : memref<128x128xf32, #tpu.memory_space<vmem>>, vector<128x128xf32>,
      %c0_23 = arith.constant 0 : index
      %c0_24 = arith.constant 0 : index
      %27 = vector.load %arg4[%c0_23, %c0_24] : memref<128x1xf32, #tpu.memory_space<vmem>>, vector<128x1xf32>
      %28 = vector.broadcast %27 : vector<128x1xf32> to vector<128x128xf32>
      %29 = arith.mulf %28, %25 : vector<128x128xf32>
      %30 = arith.truncf %29 : vector<128x128xf32> to vector<128x128xbf16>
      %c0_25 = arith.constant 0 : index
      %c0_26 = arith.constant 0 : index
      %31 = vector.load %arg8[%c0_25, %c0_26] : memref<128x128xbf16, #tpu.memory_space<vmem>>, vector<128x128xbf16>
      tpu.vector_store %arg8[%c0_25, %c0_26], %30 {strides = array<i32>} : memref<128x128xbf16, #tpu.memory_space<vmem>>, vector<128x128xbf16>,
    } else {
    }
    return
  }
  func.func @transform_0(%arg0: i32, %arg1: i32) -> (i32, i32) {
    %c0_i32 = arith.constant 0 : i32
    return %arg0, %arg1 : i32, i32
  }
  func.func @transform_1(%arg0: i32, %arg1: i32) -> (i32, i32) {
    %c0_i32 = arith.constant 0 : i32
    %c0_i32_0 = arith.constant 0 : i32
    return %arg1, %c0_i32 : i32, i32
  }
  func.func @transform_2(%arg0: i32, %arg1: i32) -> (i32, i32) {
    %c0_i32 = arith.constant 0 : i32
    %c0_i32_0 = arith.constant 0 : i32
    return %arg0, %c0_i32 : i32, i32
  }
  func.func @transform_3(%arg0: i32, %arg1: i32) -> (i32, i32) {
    %c0_i32 = arith.constant 0 : i32
    %c0_i32_0 = arith.constant 0 : i32
    %c0_i32_1 = arith.constant 0 : i32
    return %c0_i32, %c0_i32_0 : i32, i32
  }
  func.func @transform_4(%arg0: i32, %arg1: i32) -> (i32, i32) {
    %c0_i32 = arith.constant 0 : i32
    %c0_i32_0 = arith.constant 0 : i32
    %c0_i32_1 = arith.constant 0 : i32
    return %c0_i32, %c0_i32_0 : i32, i32
  }
  func.func @transform_5(%arg0: i32, %arg1: i32) -> (i32, i32) {
    %c0_i32 = arith.constant 0 : i32
    %c0_i32_0 = arith.constant 0 : i32
    return %arg0, %c0_i32 : i32, i32
  }
  func.func @transform_6(%arg0: i32, %arg1: i32) -> (i32, i32) {
    %c0_i32 = arith.constant 0 : i32
    %c0_i32_0 = arith.constant 0 : i32
    return %arg0, %c0_i32 : i32, i32
  }
}

</mosaic_0001>

<llo_original>
// kernel: tpu_custom_call.1
$region0: #{tpu_custom_call.1}
  #allocation0 [shape = 'u32[]', space=smem, size = 0x4, offset = 0x4, fixed_abs, tag = 'smem constant byte address 0x4 - core index']
  #allocation1 [shape = 'u32[72,128]{1,0:T(1,128)}', space=vmem, size = 0x9000, scoped, tag = 'internal scratch']
  #allocation2 [shape = 'f32[128,128]{1,0:T(8,128)}', space=vmem, size = 0x10000, scoped, tag = 'scratch operand']
  %s0 = inlined_call_operand.hbm [shape: bf16[128,128], index: 0, kind: input, shape index: {}]
  %s1 = inlined_call_operand.hbm [shape: bf16[128,128], index: 1, kind: input, shape index: {}]
  %s2 = inlined_call_operand.vmem [shape: f32[128,1], index: 2, kind: input, shape index: {}]
  %s3 = inlined_call_operand.vmem [shape: f32[128,128], index: 3, kind: input, shape index: {}]
  %s4 = inlined_call_operand.vmem [shape: f32[1,128], index: 4, kind: input, shape index: {}]
  %s5 = inlined_call_operand.hbm [shape: f32[128,128], index: 5, kind: output, shape index: {0}]
  %s6 = inlined_call_operand.hbm [shape: bf16[128,128], index: 6, kind: output, shape index: {1}]
  %7 = xla_tuple %s5, %s6
  %s8 = sld [smem:[#allocation0]]
  $region54: #{tpu_custom_call.1} parent=0
    _
  %s10 = ssub.s32 1, %s8
  %s11 = scalar_select 0, %s10, %s8
  $region1: #{tpu_custom_call.1} parent=0
    #allocation3 [shape = 'u8[32768]{0}', space=vmem, size = 0x8000, scoped, tag = 'input window, operand 0, single buffered']
    #allocation4 [shape = 's32[1]{0}', space=sflag, size = 0x4, scoped, tag = 'scoped memory for tpu_custom_call.1']
    #allocation5 [shape = 's32[1]{0}', space=sflag, size = 0x4, scoped, tag = 'scoped memory for tpu_custom_call.1']
    #allocation6 [shape = 'u8[32768]{0}', space=vmem, size = 0x8000, scoped, tag = 'input window, operand 1, single buffered']
    #allocation7 [shape = 's32[1]{0}', space=sflag, size = 0x4, scoped, tag = 'scoped memory for tpu_custom_call.1']
    #allocation8 [shape = 'u8[65536]{0}', space=vmem, size = 0x10000, scoped, tag = 'output window, operand 0, single buffered']
    #allocation9 [shape = 'u8[32768]{0}', space=vmem, size = 0x8000, scoped, tag = 'output window, operand 1, single buffered']
    #allocation10 [shape = 's32[1]{0}', space=sflag, size = 0x4, scoped, tag = 'scoped memory for tpu_custom_call.1']
    %12 = vsyncpa [#allocation4], 0
    %13 = vsyncpa [#allocation7], 0
    %14 = vsyncpa [#allocation5], 0
    %15 = vsyncpa [#allocation10], 0
    // Predicated region
    $region2: #{tpu_custom_call.1} parent=1 // pred_check
      _
    $region3: #{tpu_custom_call.1} parent=1 // pred_check_branch
      %17 = sbr.rel (0) target = $region5
    $region4: #{tpu_custom_call.1} parent=1 // pred_region
      %19 = vsyncadd [#allocation4], 0
      %s20 = sshll.u32 %s0, 4
      %s21 = int_to_ptr.hbm [resolvable:$true] %s20
      %s22 = sshll.u32 [#allocation3], 4
      %s23 = int_to_ptr.vmem [resolvable:$true] %s22
      %28 = dma.hbm_to_vmem [thread:$0]  %s21, 1024, %s23, [#allocation4], 64, 64, 4
    $region5: #{tpu_custom_call.1} parent=1 // pred_fallthru
      _
    // Predicated region
    $region6: #{tpu_custom_call.1} parent=1 // pred_check
      _
    $region7: #{tpu_custom_call.1} parent=1 // pred_check_branch
      %30 = sbr.rel (0) target = $region9
    $region8: #{tpu_custom_call.1} parent=1 // pred_region
      %32 = vsyncadd [#allocation7], 0
      %s33 = sshll.u32 %s1, 4
      %s34 = int_to_ptr.hbm [resolvable:$true] %s33
      %s35 = sshll.u32 [#allocation6], 4
      %s36 = int_to_ptr.vmem [resolvable:$true] %s35
      %41 = dma.hbm_to_vmem [thread:$0]  %s34, 1024, %s36, [#allocation7], 64, 64, 4
    $region9: #{tpu_custom_call.1} parent=1 // pred_fallthru
      _
    // Predicated region
    $region10: #{tpu_custom_call.1} parent=1 // pred_check
      _
    $region11: #{tpu_custom_call.1} parent=1 // pred_check_branch
      %43 = sbr.rel (0) target = $region13
    $region12: #{tpu_custom_call.1} parent=1 // pred_region
      _
    $region13: #{tpu_custom_call.1} parent=1 // pred_fallthru
      _
    // Predicated region
    $region14: #{tpu_custom_call.1} parent=1 // pred_check
      _
    $region15: #{tpu_custom_call.1} parent=1 // pred_check_branch
      %45 = sbr.rel (0) target = $region17
    $region16: #{tpu_custom_call.1} parent=1 // pred_region
      _
    $region17: #{tpu_custom_call.1} parent=1 // pred_fallthru
      _
    // Predicated region
    $region18: #{tpu_custom_call.1} parent=1 // pred_check
      _
    $region19: #{tpu_custom_call.1} parent=1 // pred_check_branch
      %47 = sbr.rel (0) target = $region21
    $region20: #{tpu_custom_call.1} parent=1 // pred_region
      _
    $region21: #{tpu_custom_call.1} parent=1 // pred_fallthru
      _
    // Predicated region
    $region22: #{tpu_custom_call.1} parent=1 // pred_check
      _
    $region23: #{tpu_custom_call.1} parent=1 // pred_check_branch
      %49 = sbr.rel (0) target = $region25
    $region24: #{tpu_custom_call.1} parent=1 // pred_region
      %51 = dma.done [#allocation4], 1024
    $region25: #{tpu_custom_call.1} parent=1 // pred_fallthru
      _
    // Predicated region
    $region26: #{tpu_custom_call.1} parent=1 // pred_check
      _
    $region27: #{tpu_custom_call.1} parent=1 // pred_check_branch
      %53 = sbr.rel (0) target = $region29
    $region28: #{tpu_custom_call.1} parent=1 // pred_region
      %55 = dma.done [#allocation7], 1024
    $region29: #{tpu_custom_call.1} parent=1 // pred_fallthru
      _
    %p56 = scmp.eq.s32.totalorder 0, 0
    // Predicated region
    $region30: #{tpu_custom_call.1} parent=1 // pred_check
      %p57 = pneg %p56
    $region31: #{tpu_custom_call.1} parent=1 // pred_check_branch
      %59 = sbr.rel (%p57) target = $region33
    $region32: #{tpu_custom_call.1} parent=1 // pred_region
      %60 = vst [vmem:[#allocation2] sm:$0xff] 0.0
      %61 = vst [vmem:[#allocation2 + $0x8] sm:$0xff] 0.0
      %62 = vst [vmem:[#allocation2 + $0x10] sm:$0xff] 0.0
      %63 = vst [vmem:[#allocation2 + $0x18] sm:$0xff] 0.0
      %64 = vst [vmem:[#allocation2 + $0x20] sm:$0xff] 0.0
      %65 = vst [vmem:[#allocation2 + $0x28] sm:$0xff] 0.0
      %66 = vst [vmem:[#allocation2 + $0x30] sm:$0xff] 0.0
      %67 = vst [vmem:[#allocation2 + $0x38] sm:$0xff] 0.0
      %68 = vst [vmem:[#allocation2 + $0x40] sm:$0xff] 0.0
      %69 = vst [vmem:[#allocation2 + $0x48] sm:$0xff] 0.0
      %70 = vst [vmem:[#allocation2 + $0x50] sm:$0xff] 0.0
      %71 = vst [vmem:[#allocation2 + $0x58] sm:$0xff] 0.0
      %72 = vst [vmem:[#allocation2 + $0x60] sm:$0xff] 0.0
      %73 = vst [vmem:[#allocation2 + $0x68] sm:$0xff] 0.0
      %74 = vst [vmem:[#allocation2 + $0x70] sm:$0xff] 0.0
      %75 = vst [vmem:[#allocation2 + $0x78] sm:$0xff] 0.0
    $region33: #{tpu_custom_call.1} parent=1 // pred_fallthru
      _
    %v76 = vld [vmem:[#allocation2] sm:$0xff]
    %v77 = vld [vmem:[#allocation2 + $0x8] sm:$0xff]
    %v78 = vld [vmem:[#allocation2 + $0x10] sm:$0xff]
    %v79 = vld [vmem:[#allocation2 + $0x18] sm:$0xff]
    %v80 = vld [vmem:[#allocation2 + $0x20] sm:$0xff]
    %v81 = vld [vmem:[#allocation2 + $0x28] sm:$0xff]
    %v82 = vld [vmem:[#allocation2 + $0x30] sm:$0xff]
    %v83 = vld [vmem:[#allocation2 + $0x38] sm:$0xff]
    %v84 = vld [vmem:[#allocation2 + $0x40] sm:$0xff]
    %v85 = vld [vmem:[#allocation2 + $0x48] sm:$0xff]
    %v86 = vld [vmem:[#allocation2 + $0x50] sm:$0xff]
    %v87 = vld [vmem:[#allocation2 + $0x58] sm:$0xff]
    %v88 = vld [vmem:[#allocation2 + $0x60] sm:$0xff]
    %v89 = vld [vmem:[#allocation2 + $0x68] sm:$0xff]
    %v90 = vld [vmem:[#allocation2 + $0x70] sm:$0xff]
    %v91 = vld [vmem:[#allocation2 + $0x78] sm:$0xff]
    %v92 = vld [vmem:[#allocation3] sm:$0xf]
    %v93 = vld [vmem:[#allocation3 + $0x4] sm:$0xf]
    %v94 = vld [vmem:[#allocation3 + $0x8] sm:$0xf]
    %v95 = vld [vmem:[#allocation3 + $0xc] sm:$0xf]
    %v96 = vld [vmem:[#allocation3 + $0x10] sm:$0xf]
    %v97 = vld [vmem:[#allocation3 + $0x14] sm:$0xf]
    %v98 = vld [vmem:[#allocation3 + $0x18] sm:$0xf]
    %v99 = vld [vmem:[#allocation3 + $0x1c] sm:$0xf]
    %v100 = vld [vmem:[#allocation3 + $0x20] sm:$0xf]
    %v101 = vld [vmem:[#allocation3 + $0x24] sm:$0xf]
    %v102 = vld [vmem:[#allocation3 + $0x28] sm:$0xf]
    %v103 = vld [vmem:[#allocation3 + $0x2c] sm:$0xf]
    %v104 = vld [vmem:[#allocation3 + $0x30] sm:$0xf]
    %v105 = vld [vmem:[#allocation3 + $0x34] sm:$0xf]
    %v106 = vld [vmem:[#allocation3 + $0x38] sm:$0xf]
    %v107 = vld [vmem:[#allocation3 + $0x3c] sm:$0xf]
    %v108 = vld [vmem:[#allocation6] sm:$0xf]
    %v109 = vld [vmem:[#allocation6 + $0x4] sm:$0xf]
    %v110 = vld [vmem:[#allocation6 + $0x8] sm:$0xf]
    %v111 = vld [vmem:[#allocation6 + $0xc] sm:$0xf]
    %v112 = vld [vmem:[#allocation6 + $0x10] sm:$0xf]
    %v113 = vld [vmem:[#allocation6 + $0x14] sm:$0xf]
    %v114 = vld [vmem:[#allocation6 + $0x18] sm:$0xf]
    %v115 = vld [vmem:[#allocation6 + $0x1c] sm:$0xf]
    %v116 = vld [vmem:[#allocation6 + $0x20] sm:$0xf]
    %v117 = vld [vmem:[#allocation6 + $0x24] sm:$0xf]
    %v118 = vld [vmem:[#allocation6 + $0x28] sm:$0xf]
    %v119 = vld [vmem:[#allocation6 + $0x2c] sm:$0xf]
    %v120 = vld [vmem:[#allocation6 + $0x30] sm:$0xf]
    %v121 = vld [vmem:[#allocation6 + $0x34] sm:$0xf]
    %v122 = vld [vmem:[#allocation6 + $0x38] sm:$0xf]
    %v123 = vld [vmem:[#allocation6 + $0x3c] sm:$0xf]
    %v140 = vunpack.c.l.b16 %v92
    %v141 = vunpack.c.l.b16 %v93
    %v142 = vunpack.c.l.b16 %v94
    %v143 = vunpack.c.l.b16 %v95
    %v144 = vunpack.c.l.b16 %v96
    %v145 = vunpack.c.l.b16 %v97
    %v146 = vunpack.c.l.b16 %v98
    %v147 = vunpack.c.l.b16 %v99
    %v148 = vunpack.c.l.b16 %v100
    %v149 = vunpack.c.l.b16 %v101
    %v150 = vunpack.c.l.b16 %v102
    %v151 = vunpack.c.l.b16 %v103
    %v152 = vunpack.c.l.b16 %v104
    %v153 = vunpack.c.l.b16 %v105
    %v154 = vunpack.c.l.b16 %v106
    %v155 = vunpack.c.l.b16 %v107
    %v156 = vpack.c.b16 %v141, %v140
    %v157 = vpack.c.b16 %v143, %v142
    %v158 = vpack.c.b16 %v145, %v144
    %v159 = vpack.c.b16 %v147, %v146
    %v160 = vpack.c.b16 %v149, %v148
    %v161 = vpack.c.b16 %v151, %v150
    %v162 = vpack.c.b16 %v153, %v152
    %v163 = vpack.c.b16 %v155, %v154
    %v188 = vunpack.c.l.b16 %v108
    %v189 = vunpack.c.l.b16 %v109
    %v190 = vunpack.c.l.b16 %v110
    %v191 = vunpack.c.l.b16 %v111
    %v192 = vunpack.c.l.b16 %v112
    %v193 = vunpack.c.l.b16 %v113
    %v194 = vunpack.c.l.b16 %v114
    %v195 = vunpack.c.l.b16 %v115
    %v196 = vunpack.c.l.b16 %v116
    %v197 = vunpack.c.l.b16 %v117
    %v198 = vunpack.c.l.b16 %v118
    %v199 = vunpack.c.l.b16 %v119
    %v200 = vunpack.c.l.b16 %v120
    %v201 = vunpack.c.l.b16 %v121
    %v202 = vunpack.c.l.b16 %v122
    %v203 = vunpack.c.l.b16 %v123
    %v204 = vpack.c.b16 %v189, %v188
    %v205 = vpack.c.b16 %v191, %v190
    %v206 = vpack.c.b16 %v193, %v192
    %v207 = vpack.c.b16 %v195, %v194
    %v208 = vpack.c.b16 %v197, %v196
    %v209 = vpack.c.b16 %v199, %v198
    %v210 = vpack.c.b16 %v201, %v200
    %v211 = vpack.c.b16 %v203, %v202
    %220 = vmatpush.bf16.msra.mxu0 %v211
    %221 = vmatpush.bf16.msra.mxu0 %v210
    %222 = vmatpush.bf16.msra.mxu0 %v209
    %223 = vmatpush.bf16.msra.mxu0 %v208
    %224 = vmatpush.bf16.msra.mxu0 %v207
    %225 = vmatpush.bf16.msra.mxu0 %v206
    %226 = vmatpush.bf16.msra.mxu0 %v205
    %227 = vmatpush.bf16.msra.mxu0 %v204
    %228 = vmatmul.bf16.gmra.mxu0 %v156
    %v229 = vpop.f32.mrf.mxu0
    %v230 = vadd.f32 0.0, %v229
    %v231 = vpop.f32.mrf.mxu0
    %v232 = vadd.f32 0.0, %v231
    %233 = vmatmul.bf16.gmra.mxu0 %v157
    %v234 = vpop.f32.mrf.mxu0
    %v235 = vadd.f32 0.0, %v234
    %v236 = vpop.f32.mrf.mxu0
    %v237 = vadd.f32 0.0, %v236
    %238 = vmatmul.bf16.gmra.mxu0 %v158
    %v239 = vpop.f32.mrf.mxu0
    %v240 = vadd.f32 0.0, %v239
    %v241 = vpop.f32.mrf.mxu0
    %v242 = vadd.f32 0.0, %v241
    %243 = vmatmul.bf16.gmra.mxu0 %v159
    %v244 = vpop.f32.mrf.mxu0
    %v245 = vadd.f32 0.0, %v244
    %v246 = vpop.f32.mrf.mxu0
    %v247 = vadd.f32 0.0, %v246
    %248 = vmatmul.bf16.gmra.mxu0 %v160
    %v249 = vpop.f32.mrf.mxu0
    %v250 = vadd.f32 0.0, %v249
    %v251 = vpop.f32.mrf.mxu0
    %v252 = vadd.f32 0.0, %v251
    %253 = vmatmul.bf16.gmra.mxu0 %v161
    %v254 = vpop.f32.mrf.mxu0
    %v255 = vadd.f32 0.0, %v254
    %v256 = vpop.f32.mrf.mxu0
    %v257 = vadd.f32 0.0, %v256
    %258 = vmatmul.bf16.gmra.mxu0 %v162
    %v259 = vpop.f32.mrf.mxu0
    %v260 = vadd.f32 0.0, %v259
    %v261 = vpop.f32.mrf.mxu0
    %v262 = vadd.f32 0.0, %v261
    %263 = vmatmul.bf16.gmra.mxu0 %v163
    %v264 = vpop.f32.mrf.mxu0
    %v265 = vadd.f32 0.0, %v264
    %v266 = vpop.f32.mrf.mxu0
    %v267 = vadd.f32 0.0, %v266
    %268 = vdwg.mxu0
    %v269 = vadd.f32 %v76, %v230
    %v270 = vadd.f32 %v77, %v232
    %v271 = vadd.f32 %v78, %v235
    %v272 = vadd.f32 %v79, %v237
    %v273 = vadd.f32 %v80, %v240
    %v274 = vadd.f32 %v81, %v242
    %v275 = vadd.f32 %v82, %v245
    %v276 = vadd.f32 %v83, %v247
    %v277 = vadd.f32 %v84, %v250
    %v278 = vadd.f32 %v85, %v252
    %v279 = vadd.f32 %v86, %v255
    %v280 = vadd.f32 %v87, %v257
    %v281 = vadd.f32 %v88, %v260
    %v282 = vadd.f32 %v89, %v262
    %v283 = vadd.f32 %v90, %v265
    %v284 = vadd.f32 %v91, %v267
    %285 = vst [vmem:[#allocation2] sm:$0xff] %v269
    %286 = vst [vmem:[#allocation2 + $0x8] sm:$0xff] %v270
    %287 = vst [vmem:[#allocation2 + $0x10] sm:$0xff] %v271
    %288 = vst [vmem:[#allocation2 + $0x18] sm:$0xff] %v272
    %289 = vst [vmem:[#allocation2 + $0x20] sm:$0xff] %v273
    %290 = vst [vmem:[#allocation2 + $0x28] sm:$0xff] %v274
    %291 = vst [vmem:[#allocation2 + $0x30] sm:$0xff] %v275
    %292 = vst [vmem:[#allocation2 + $0x38] sm:$0xff] %v276
    %293 = vst [vmem:[#allocation2 + $0x40] sm:$0xff] %v277
    %294 = vst [vmem:[#allocation2 + $0x48] sm:$0xff] %v278
    %295 = vst [vmem:[#allocation2 + $0x50] sm:$0xff] %v279
    %296 = vst [vmem:[#allocation2 + $0x58] sm:$0xff] %v280
    %297 = vst [vmem:[#allocation2 + $0x60] sm:$0xff] %v281
    %298 = vst [vmem:[#allocation2 + $0x68] sm:$0xff] %v282
    %299 = vst [vmem:[#allocation2 + $0x70] sm:$0xff] %v283
    %300 = vst [vmem:[#allocation2 + $0x78] sm:$0xff] %v284
    // Predicated region
    $region34: #{tpu_custom_call.1} parent=1 // pred_check
      %p301 = pneg %p56
    $region35: #{tpu_custom_call.1} parent=1 // pred_check_branch
      %303 = sbr.rel (%p301) target = $region37
    $region36: #{tpu_custom_call.1} parent=1 // pred_region
      %v304 = vld [vmem:[%s2] sm:$0xff]
      %v305 = vld [vmem:[%s2 + $0x8] sm:$0xff]
      %v306 = vld [vmem:[%s2 + $0x10] sm:$0xff]
      %v307 = vld [vmem:[%s2 + $0x18] sm:$0xff]
      %v308 = vld [vmem:[%s2 + $0x20] sm:$0xff]
      %v309 = vld [vmem:[%s2 + $0x28] sm:$0xff]
      %v310 = vld [vmem:[%s2 + $0x30] sm:$0xff]
      %v311 = vld [vmem:[%s2 + $0x38] sm:$0xff]
      %v312 = vld [vmem:[%s2 + $0x40] sm:$0xff]
      %v313 = vld [vmem:[%s2 + $0x48] sm:$0xff]
      %v314 = vld [vmem:[%s2 + $0x50] sm:$0xff]
      %v315 = vld [vmem:[%s2 + $0x58] sm:$0xff]
      %v316 = vld [vmem:[%s2 + $0x60] sm:$0xff]
      %v317 = vld [vmem:[%s2 + $0x68] sm:$0xff]
      %v318 = vld [vmem:[%s2 + $0x70] sm:$0xff]
      %v319 = vld [vmem:[%s2 + $0x78] sm:$0xff]
      %v320 = vld [vmem:[#allocation2] sm:$0xff]
      %v321 = vld [vmem:[#allocation2 + $0x8] sm:$0xff]
      %v322 = vld [vmem:[#allocation2 + $0x10] sm:$0xff]
      %v323 = vld [vmem:[#allocation2 + $0x18] sm:$0xff]
      %v324 = vld [vmem:[#allocation2 + $0x20] sm:$0xff]
      %v325 = vld [vmem:[#allocation2 + $0x28] sm:$0xff]
      %v326 = vld [vmem:[#allocation2 + $0x30] sm:$0xff]
      %v327 = vld [vmem:[#allocation2 + $0x38] sm:$0xff]
      %v328 = vld [vmem:[#allocation2 + $0x40] sm:$0xff]
      %v329 = vld [vmem:[#allocation2 + $0x48] sm:$0xff]
      %v330 = vld [vmem:[#allocation2 + $0x50] sm:$0xff]
      %v331 = vld [vmem:[#allocation2 + $0x58] sm:$0xff]
      %v332 = vld [vmem:[#allocation2 + $0x60] sm:$0xff]
      %v333 = vld [vmem:[#allocation2 + $0x68] sm:$0xff]
      %v334 = vld [vmem:[#allocation2 + $0x70] sm:$0xff]
      %v335 = vld [vmem:[#allocation2 + $0x78] sm:$0xff]
      %337 = vset.pattern.permute.xlu0 0
      %338 = vperm.xlu0 %337, %v304
      %v339 = vpop.permute.xlu0 %338
      %342 = vset.pattern.permute.xlu0 0
      %343 = vperm.xlu0 %342, %v305
      %v344 = vpop.permute.xlu0 %343
      %347 = vset.pattern.permute.xlu0 0
      %348 = vperm.xlu0 %347, %v306
      %v349 = vpop.permute.xlu0 %348
      %352 = vset.pattern.permute.xlu0 0
      %353 = vperm.xlu0 %352, %v307
      %v354 = vpop.permute.xlu0 %353
      %357 = vset.pattern.permute.xlu0 0
      %358 = vperm.xlu0 %357, %v308
      %v359 = vpop.permute.xlu0 %358
      %362 = vset.pattern.permute.xlu0 0
      %363 = vperm.xlu0 %362, %v309
      %v364 = vpop.permute.xlu0 %363
      %367 = vset.pattern.permute.xlu0 0
      %368 = vperm.xlu0 %367, %v310
      %v369 = vpop.permute.xlu0 %368
      %372 = vset.pattern.permute.xlu0 0
      %373 = vperm.xlu0 %372, %v311
      %v374 = vpop.permute.xlu0 %373
      %377 = vset.pattern.permute.xlu0 0
      %378 = vperm.xlu0 %377, %v312
      %v379 = vpop.permute.xlu0 %378
      %382 = vset.pattern.permute.xlu0 0
      %383 = vperm.xlu0 %382, %v313
      %v384 = vpop.permute.xlu0 %383
      %387 = vset.pattern.permute.xlu0 0
      %388 = vperm.xlu0 %387, %v314
      %v389 = vpop.permute.xlu0 %388
      %392 = vset.pattern.permute.xlu0 0
      %393 = vperm.xlu0 %392, %v315
      %v394 = vpop.permute.xlu0 %393
      %397 = vset.pattern.permute.xlu0 0
      %398 = vperm.xlu0 %397, %v316
      %v399 = vpop.permute.xlu0 %398
      %402 = vset.pattern.permute.xlu0 0
      %403 = vperm.xlu0 %402, %v317
      %v404 = vpop.permute.xlu0 %403
      %407 = vset.pattern.permute.xlu0 0
      %408 = vperm.xlu0 %407, %v318
      %v409 = vpop.permute.xlu0 %408
      %412 = vset.pattern.permute.xlu0 0
      %413 = vperm.xlu0 %412, %v319
      %v414 = vpop.permute.xlu0 %413
      %v416 = vmul.f32 %v339, %v320
      %v417 = vmul.f32 %v344, %v321
      %v418 = vmul.f32 %v349, %v322
      %v419 = vmul.f32 %v354, %v323
      %v420 = vmul.f32 %v359, %v324
      %v421 = vmul.f32 %v364, %v325
      %v422 = vmul.f32 %v369, %v326
      %v423 = vmul.f32 %v374, %v327
      %v424 = vmul.f32 %v379, %v328
      %v425 = vmul.f32 %v384, %v329
      %v426 = vmul.f32 %v389, %v330
      %v427 = vmul.f32 %v394, %v331
      %v428 = vmul.f32 %v399, %v332
      %v429 = vmul.f32 %v404, %v333
      %v430 = vmul.f32 %v409, %v334
      %v431 = vmul.f32 %v414, %v335
      %v432 = vld [vmem:[%s3] sm:$0xff]
      %v433 = vld [vmem:[%s3 + $0x8] sm:$0xff]
      %v434 = vld [vmem:[%s3 + $0x10] sm:$0xff]
      %v435 = vld [vmem:[%s3 + $0x18] sm:$0xff]
      %v436 = vld [vmem:[%s3 + $0x20] sm:$0xff]
      %v437 = vld [vmem:[%s3 + $0x28] sm:$0xff]
      %v438 = vld [vmem:[%s3 + $0x30] sm:$0xff]
      %v439 = vld [vmem:[%s3 + $0x38] sm:$0xff]
      %v440 = vld [vmem:[%s3 + $0x40] sm:$0xff]
      %v441 = vld [vmem:[%s3 + $0x48] sm:$0xff]
      %v442 = vld [vmem:[%s3 + $0x50] sm:$0xff]
      %v443 = vld [vmem:[%s3 + $0x58] sm:$0xff]
      %v444 = vld [vmem:[%s3 + $0x60] sm:$0xff]
      %v445 = vld [vmem:[%s3 + $0x68] sm:$0xff]
      %v446 = vld [vmem:[%s3 + $0x70] sm:$0xff]
      %v447 = vld [vmem:[%s3 + $0x78] sm:$0xff]
      %v448 = vld [vmem:[%s4] sm:$0x1]
      %v450 = vperm.slane %v448, 0
      %452 = vmatpush.msra.mxu0 %v447
      %453 = vmatpush.msra.mxu0 %v446
      %454 = vmatpush.msra.mxu0 %v445
      %455 = vmatpush.msra.mxu0 %v444
      %456 = vmatpush.msra.mxu0 %v443
      %457 = vmatpush.msra.mxu0 %v442
      %458 = vmatpush.msra.mxu0 %v441
      %459 = vmatpush.msra.mxu0 %v440
      %460 = vmatpush.msra.mxu0 %v439
      %461 = vmatpush.msra.mxu0 %v438
      %462 = vmatpush.msra.mxu0 %v437
      %463 = vmatpush.msra.mxu0 %v436
      %464 = vmatpush.msra.mxu0 %v435
      %465 = vmatpush.msra.mxu0 %v434
      %466 = vmatpush.msra.mxu0 %v433
      %467 = vmatpush.msra.mxu0 %v432
      %468 = vmatmul.f32.gmra.mxu0 %v416
      %v469 = vpop.f32.mrf.mxu0
      %v470 = vadd.f32 %v450, %v469
      %471 = vmatmul.f32.gmra.mxu0 %v417
      %v472 = vpop.f32.mrf.mxu0
      %v473 = vadd.f32 %v450, %v472
      %474 = vmatmul.f32.gmra.mxu0 %v418
      %v475 = vpop.f32.mrf.mxu0
      %v476 = vadd.f32 %v450, %v475
      %477 = vmatmul.f32.gmra.mxu0 %v419
      %v478 = vpop.f32.mrf.mxu0
      %v479 = vadd.f32 %v450, %v478
      %480 = vmatmul.f32.gmra.mxu0 %v420
      %v481 = vpop.f32.mrf.mxu0
      %v482 = vadd.f32 %v450, %v481
      %483 = vmatmul.f32.gmra.mxu0 %v421
      %v484 = vpop.f32.mrf.mxu0
      %v485 = vadd.f32 %v450, %v484
      %486 = vmatmul.f32.gmra.mxu0 %v422
      %v487 = vpop.f32.mrf.mxu0
      %v488 = vadd.f32 %v450, %v487
      %489 = vmatmul.f32.gmra.mxu0 %v423
      %v490 = vpop.f32.mrf.mxu0
      %v491 = vadd.f32 %v450, %v490
      %492 = vmatmul.f32.gmra.mxu0 %v424
      %v493 = vpop.f32.mrf.mxu0
      %v494 = vadd.f32 %v450, %v493
      %495 = vmatmul.f32.gmra.mxu0 %v425
      %v496 = vpop.f32.mrf.mxu0
      %v497 = vadd.f32 %v450, %v496
      %498 = vmatmul.f32.gmra.mxu0 %v426
      %v499 = vpop.f32.mrf.mxu0
      %v500 = vadd.f32 %v450, %v499
      %501 = vmatmul.f32.gmra.mxu0 %v427
      %v502 = vpop.f32.mrf.mxu0
      %v503 = vadd.f32 %v450, %v502
      %504 = vmatmul.f32.gmra.mxu0 %v428
      %v505 = vpop.f32.mrf.mxu0
      %v506 = vadd.f32 %v450, %v505
      %507 = vmatmul.f32.gmra.mxu0 %v429
      %v508 = vpop.f32.mrf.mxu0
      %v509 = vadd.f32 %v450, %v508
      %510 = vmatmul.f32.gmra.mxu0 %v430
      %v511 = vpop.f32.mrf.mxu0
      %v512 = vadd.f32 %v450, %v511
      %513 = vmatmul.f32.gmra.mxu0 %v431
      %v514 = vpop.f32.mrf.mxu0
      %v515 = vadd.f32 %v450, %v514
      %516 = vdwg.mxu0
      %vm517 = vcmp.ge.f32.partialorder %v470, 0.0
      %vm518 = vcmp.ge.f32.partialorder %v473, 0.0
      %vm519 = vcmp.ge.f32.partialorder %v476, 0.0
      %vm520 = vcmp.ge.f32.partialorder %v479, 0.0
      %vm521 = vcmp.ge.f32.partialorder %v482, 0.0
      %vm522 = vcmp.ge.f32.partialorder %v485, 0.0
      %vm523 = vcmp.ge.f32.partialorder %v488, 0.0
      %vm524 = vcmp.ge.f32.partialorder %v491, 0.0
      %vm525 = vcmp.ge.f32.partialorder %v494, 0.0
      %vm526 = vcmp.ge.f32.partialorder %v497, 0.0
      %vm527 = vcmp.ge.f32.partialorder %v500, 0.0
      %vm528 = vcmp.ge.f32.partialorder %v503, 0.0
      %vm529 = vcmp.ge.f32.partialorder %v506, 0.0
      %vm530 = vcmp.ge.f32.partialorder %v509, 0.0
      %vm531 = vcmp.ge.f32.partialorder %v512, 0.0
      %vm532 = vcmp.ge.f32.partialorder %v515, 0.0
      %v533 = vmul.f32 %v470, 0.01
      %v534 = vmul.f32 %v473, 0.01
      %v535 = vmul.f32 %v476, 0.01
      %v536 = vmul.f32 %v479, 0.01
      %v537 = vmul.f32 %v482, 0.01
      %v538 = vmul.f32 %v485, 0.01
      %v539 = vmul.f32 %v488, 0.01
      %v540 = vmul.f32 %v491, 0.01
      %v541 = vmul.f32 %v494, 0.01
      %v542 = vmul.f32 %v497, 0.01
      %v543 = vmul.f32 %v500, 0.01
      %v544 = vmul.f32 %v503, 0.01
      %v545 = vmul.f32 %v506, 0.01
      %v546 = vmul.f32 %v509, 0.01
      %v547 = vmul.f32 %v512, 0.01
      %v548 = vmul.f32 %v515, 0.01
      %v549 = vsel %vm517, %v470, %v533
      %v550 = vsel %vm518, %v473, %v534
      %v551 = vsel %vm519, %v476, %v535
      %v552 = vsel %vm520, %v479, %v536
      %v553 = vsel %vm521, %v482, %v537
      %v554 = vsel %vm522, %v485, %v538
      %v555 = vsel %vm523, %v488, %v539
      %v556 = vsel %vm524, %v491, %v540
      %v557 = vsel %vm525, %v494, %v541
      %v558 = vsel %vm526, %v497, %v542
      %v559 = vsel %vm527, %v500, %v543
      %v560 = vsel %vm528, %v503, %v544
      %v561 = vsel %vm529, %v506, %v545
      %v562 = vsel %vm530, %v509, %v546
      %v563 = vsel %vm531, %v512, %v547
      %v564 = vsel %vm532, %v515, %v548
      %565 = vst [vmem:[#allocation8] sm:$0xff] %v549
      %566 = vst [vmem:[#allocation8 + $0x8] sm:$0xff] %v550
      %567 = vst [vmem:[#allocation8 + $0x10] sm:$0xff] %v551
      %568 = vst [vmem:[#allocation8 + $0x18] sm:$0xff] %v552
      %569 = vst [vmem:[#allocation8 + $0x20] sm:$0xff] %v553
      %570 = vst [vmem:[#allocation8 + $0x28] sm:$0xff] %v554
      %571 = vst [vmem:[#allocation8 + $0x30] sm:$0xff] %v555
      %572 = vst [vmem:[#allocation8 + $0x38] sm:$0xff] %v556
      %573 = vst [vmem:[#allocation8 + $0x40] sm:$0xff] %v557
      %574 = vst [vmem:[#allocation8 + $0x48] sm:$0xff] %v558
      %575 = vst [vmem:[#allocation8 + $0x50] sm:$0xff] %v559
      %576 = vst [vmem:[#allocation8 + $0x58] sm:$0xff] %v560
      %577 = vst [vmem:[#allocation8 + $0x60] sm:$0xff] %v561
      %578 = vst [vmem:[#allocation8 + $0x68] sm:$0xff] %v562
      %579 = vst [vmem:[#allocation8 + $0x70] sm:$0xff] %v563
      %580 = vst [vmem:[#allocation8 + $0x78] sm:$0xff] %v564
      %v581 = vld [vmem:[%s2] sm:$0xff]
      %v582 = vld [vmem:[%s2 + $0x8] sm:$0xff]
      %v583 = vld [vmem:[%s2 + $0x10] sm:$0xff]
      %v584 = vld [vmem:[%s2 + $0x18] sm:$0xff]
      %v585 = vld [vmem:[%s2 + $0x20] sm:$0xff]
      %v586 = vld [vmem:[%s2 + $0x28] sm:$0xff]
      %v587 = vld [vmem:[%s2 + $0x30] sm:$0xff]
      %v588 = vld [vmem:[%s2 + $0x38] sm:$0xff]
      %v589 = vld [vmem:[%s2 + $0x40] sm:$0xff]
      %v590 = vld [vmem:[%s2 + $0x48] sm:$0xff]
      %v591 = vld [vmem:[%s2 + $0x50] sm:$0xff]
      %v592 = vld [vmem:[%s2 + $0x58] sm:$0xff]
      %v593 = vld [vmem:[%s2 + $0x60] sm:$0xff]
      %v594 = vld [vmem:[%s2 + $0x68] sm:$0xff]
      %v595 = vld [vmem:[%s2 + $0x70] sm:$0xff]
      %v596 = vld [vmem:[%s2 + $0x78] sm:$0xff]
      %598 = vset.pattern.permute.xlu0 0
      %599 = vperm.xlu0 %598, %v581
      %v600 = vpop.permute.xlu0 %599
      %603 = vset.pattern.permute.xlu0 0
      %604 = vperm.xlu0 %603, %v582
      %v605 = vpop.permute.xlu0 %604
      %608 = vset.pattern.permute.xlu0 0
      %609 = vperm.xlu0 %608, %v583
      %v610 = vpop.permute.xlu0 %609
      %613 = vset.pattern.permute.xlu0 0
      %614 = vperm.xlu0 %613, %v584
      %v615 = vpop.permute.xlu0 %614
      %618 = vset.pattern.permute.xlu0 0
      %619 = vperm.xlu0 %618, %v585
      %v620 = vpop.permute.xlu0 %619
      %623 = vset.pattern.permute.xlu0 0
      %624 = vperm.xlu0 %623, %v586
      %v625 = vpop.permute.xlu0 %624
      %628 = vset.pattern.permute.xlu0 0
      %629 = vperm.xlu0 %628, %v587
      %v630 = vpop.permute.xlu0 %629
      %633 = vset.pattern.permute.xlu0 0
      %634 = vperm.xlu0 %633, %v588
      %v635 = vpop.permute.xlu0 %634
      %638 = vset.pattern.permute.xlu0 0
      %639 = vperm.xlu0 %638, %v589
      %v640 = vpop.permute.xlu0 %639
      %643 = vset.pattern.permute.xlu0 0
      %644 = vperm.xlu0 %643, %v590
      %v645 = vpop.permute.xlu0 %644
      %648 = vset.pattern.permute.xlu0 0
      %649 = vperm.xlu0 %648, %v591
      %v650 = vpop.permute.xlu0 %649
      %653 = vset.pattern.permute.xlu0 0
      %654 = vperm.xlu0 %653, %v592
      %v655 = vpop.permute.xlu0 %654
      %658 = vset.pattern.permute.xlu0 0
      %659 = vperm.xlu0 %658, %v593
      %v660 = vpop.permute.xlu0 %659
      %663 = vset.pattern.permute.xlu0 0
      %664 = vperm.xlu0 %663, %v594
      %v665 = vpop.permute.xlu0 %664
      %668 = vset.pattern.permute.xlu0 0
      %669 = vperm.xlu0 %668, %v595
      %v670 = vpop.permute.xlu0 %669
      %673 = vset.pattern.permute.xlu0 0
      %674 = vperm.xlu0 %673, %v596
      %v675 = vpop.permute.xlu0 %674
      %v677 = vmul.f32 %v600, %v549
      %v678 = vmul.f32 %v605, %v550
      %v679 = vmul.f32 %v610, %v551
      %v680 = vmul.f32 %v615, %v552
      %v681 = vmul.f32 %v620, %v553
      %v682 = vmul.f32 %v625, %v554
      %v683 = vmul.f32 %v630, %v555
      %v684 = vmul.f32 %v635, %v556
      %v685 = vmul.f32 %v640, %v557
      %v686 = vmul.f32 %v645, %v558
      %v687 = vmul.f32 %v650, %v559
      %v688 = vmul.f32 %v655, %v560
      %v689 = vmul.f32 %v660, %v561
      %v690 = vmul.f32 %v665, %v562
      %v691 = vmul.f32 %v670, %v563
      %v692 = vmul.f32 %v675, %v564
      %v693 = vpack.c.bf16 %v677, %v677
      %v694 = vpack.c.bf16 %v678, %v678
      %v695 = vpack.c.bf16 %v679, %v679
      %v696 = vpack.c.bf16 %v680, %v680
      %v697 = vpack.c.bf16 %v681, %v681
      %v698 = vpack.c.bf16 %v682, %v682
      %v699 = vpack.c.bf16 %v683, %v683
      %v700 = vpack.c.bf16 %v684, %v684
      %v701 = vpack.c.bf16 %v685, %v685
      %v702 = vpack.c.bf16 %v686, %v686
      %v703 = vpack.c.bf16 %v687, %v687
      %v704 = vpack.c.bf16 %v688, %v688
      %v705 = vpack.c.bf16 %v689, %v689
      %v706 = vpack.c.bf16 %v690, %v690
      %v707 = vpack.c.bf16 %v691, %v691
      %v708 = vpack.c.bf16 %v692, %v692
      %709 = vst [vmem:[#allocation9] sm:$0xf] %v693
      %710 = vst [vmem:[#allocation9 + $0x4] sm:$0xf] %v694
      %711 = vst [vmem:[#allocation9 + $0x8] sm:$0xf] %v695
      %712 = vst [vmem:[#allocation9 + $0xc] sm:$0xf] %v696
      %713 = vst [vmem:[#allocation9 + $0x10] sm:$0xf] %v697
      %714 = vst [vmem:[#allocation9 + $0x14] sm:$0xf] %v698
      %715 = vst [vmem:[#allocation9 + $0x18] sm:$0xf] %v699
      %716 = vst [vmem:[#allocation9 + $0x1c] sm:$0xf] %v700
      %717 = vst [vmem:[#allocation9 + $0x20] sm:$0xf] %v701
      %718 = vst [vmem:[#allocation9 + $0x24] sm:$0xf] %v702
      %719 = vst [vmem:[#allocation9 + $0x28] sm:$0xf] %v703
      %720 = vst [vmem:[#allocation9 + $0x2c] sm:$0xf] %v704
      %721 = vst [vmem:[#allocation9 + $0x30] sm:$0xf] %v705
      %722 = vst [vmem:[#allocation9 + $0x34] sm:$0xf] %v706
      %723 = vst [vmem:[#allocation9 + $0x38] sm:$0xf] %v707
      %724 = vst [vmem:[#allocation9 + $0x3c] sm:$0xf] %v708
    $region37: #{tpu_custom_call.1} parent=1 // pred_fallthru
      _
    // Predicated region
    $region38: #{tpu_custom_call.1} parent=1 // pred_check
      _
    $region39: #{tpu_custom_call.1} parent=1 // pred_check_branch
      %726 = sbr.rel (0) target = $region41
    $region40: #{tpu_custom_call.1} parent=1 // pred_region
      %728 = vsyncadd [#allocation5], 0
      %s729 = sshll.u32 [#allocation8], 4
      %s730 = int_to_ptr.vmem [resolvable:$true] %s729
      %s731 = sshll.u32 %s5, 4
      %s732 = int_to_ptr.hbm [resolvable:$true] %s731
      %737 = dma.vmem_to_hbm [thread:$0]  %s730, 2048, %s732, [#allocation5], 128, 128, 8
    $region41: #{tpu_custom_call.1} parent=1 // pred_fallthru
      _
    // Predicated region
    $region42: #{tpu_custom_call.1} parent=1 // pred_check
      _
    $region43: #{tpu_custom_call.1} parent=1 // pred_check_branch
      %739 = sbr.rel (0) target = $region45
    $region44: #{tpu_custom_call.1} parent=1 // pred_region
      %741 = vsyncadd [#allocation10], 0
      %s742 = sshll.u32 [#allocation9], 4
      %s743 = int_to_ptr.vmem [resolvable:$true] %s742
      %s744 = sshll.u32 %s6, 4
      %s745 = int_to_ptr.hbm [resolvable:$true] %s744
      %750 = dma.vmem_to_hbm [thread:$0]  %s743, 1024, %s745, [#allocation10], 64, 64, 4
    $region45: #{tpu_custom_call.1} parent=1 // pred_fallthru
      _
    // Predicated region
    $region46: #{tpu_custom_call.1} parent=1 // pred_check
      _
    $region47: #{tpu_custom_call.1} parent=1 // pred_check_branch
      %752 = sbr.rel (0) target = $region49
    $region48: #{tpu_custom_call.1} parent=1 // pred_region
      %754 = dma.done [#allocation5], 2048
    $region49: #{tpu_custom_call.1} parent=1 // pred_fallthru
      _
    // Predicated region
    $region50: #{tpu_custom_call.1} parent=1 // pred_check
      _
    $region51: #{tpu_custom_call.1} parent=1 // pred_check_branch
      %756 = sbr.rel (0) target = $region53
    $region52: #{tpu_custom_call.1} parent=1 // pred_region
      %758 = dma.done [#allocation10], 1024
    $region53: #{tpu_custom_call.1} parent=1 // pred_fallthru
      _
    %759 = vsyncpa [#allocation4], 1
    %760 = vsyncpa [#allocation7], 1
    %761 = vsyncpa [#allocation5], 1
    %762 = vsyncpa [#allocation10], 1

</llo_original>
